<compile_context>
chip_gen: v7x
topology: tpu7x:2x2x1
jax: 0.10.0
libtpu: 0.0.40
codegen_flags: <defaults>
</compile_context>

<pallas_src>
import functools

import jax
import jax.numpy as jnp
from jax.experimental import pallas as pl
from jax.experimental.pallas import tpu as pltpu

_LANE = 128                    # vreg lane width; accumulator lane width
_F32_EPS = 1.1920929e-07       # torch.finfo(torch.float32).eps  (Python float, not a
                               # captured jnp constant -- fixes the trace-time error)


def _spex_stats_kernel(s1_ref, s2_ref, s3_ref, t_ref, out_ref, *, n_chunks, lane):
    """Accumulate 7 per-sample lane-partial statistics over the time axis.

    out_ref: (B, 7*lane) resident accumulator (same output block for every step of
    the reduction axis).  Lane layout: [t*t | s1*t | s1*s1 | s2*t | s2*s2 | s3*t |
    s3*s3], each `lane` wide.  Cross-lane reduction is done in the wrapper.
    """
    k = pl.program_id(1)   # time (reduction) axis

    def chunk_stats(j):
        lo = j * lane
        tc = t_ref[:, lo:lo + lane].astype(jnp.float32)
        c1 = s1_ref[:, lo:lo + lane].astype(jnp.float32)
        c2 = s2_ref[:, lo:lo + lane].astype(jnp.float32)
        c3 = s3_ref[:, lo:lo + lane].astype(jnp.float32)
        return (tc * tc, c1 * tc, c1 * c1, c2 * tc, c2 * c2, c3 * tc, c3 * c3)

    # Pure-VPU accumulation in registers; per-chunk loads co-issue with the adds.
    acc = chunk_stats(0)
    for j in range(1, n_chunks):
        acc = tuple(a + b for a, b in zip(acc, chunk_stats(j)))

    @pl.when(k == 0)
    def _assign():
        for i, a in enumerate(acc):
            out_ref[:, i * lane:(i + 1) * lane] = a

    @pl.when(k > 0)
    def _accumulate():
        for i, a in enumerate(acc):
            out_ref[:, i * lane:(i + 1) * lane] += a


def spex_loss(s1, s2, s3, target, target_id=None, sp_logits=None, *,
              alpha, beta, gamma=0.0, time_tile=None, n_cores=2):
    """Pallas implementation of SpexLoss.forward. Returns a scalar float32."""
    B, T = target.shape
    assert s1.shape == s2.shape == s3.shape == target.shape

    itemsize = jnp.dtype(target.dtype).itemsize

    # ---- pick the time tile from a VMEM budget (review: big streaming tiles) ----
    if time_tile is None:
        budget = 16 << 20                       # bytes for 4 double-buffered inputs
        tT = budget // (4 * 2 * B * itemsize)   # fits v5e/v6e/v7x scoped VMEM
        tT = min(tT, 32768)
    else:
        tT = int(time_tile)
    per_core = -(-T // n_cores)                 # cdiv
    per_core = -(-per_core // _LANE) * _LANE    # round up to lane multiple
    tT = max(_LANE, min((tT // _LANE) * _LANE, per_core))

    n_steps = -(-T // (n_cores * tT))
    T_pad = n_cores * n_steps * tT
    if T_pad != T:
        # Zero-padding the time axis is exact: zeros contribute nothing to any sum.
        pad = ((0, 0), (0, T_pad - T))
        s1 = jnp.pad(s1, pad)
        s2 = jnp.pad(s2, pad)
        s3 = jnp.pad(s3, pad)
        target = jnp.pad(target, pad)

    audio_spec = pl.BlockSpec((B, tT), lambda p, k: (0, p * n_steps + k))
    out_spec = pl.BlockSpec((None, B, 7 * _LANE), lambda p, k: (p, 0, 0))

    vmem_limit = int(4 * 2 * B * tT * itemsize + 2 * B * 7 * _LANE * 4 + (4 << 20))
    vmem_limit = min(max(vmem_limit, 8 << 20), 64 << 20)

    kernel = functools.partial(_spex_stats_kernel, n_chunks=tT // _LANE, lane=_LANE)

    stats = pl.pallas_call(
        kernel,
        out_shape=jax.ShapeDtypeStruct((n_cores, B, 7 * _LANE), jnp.float32),
        grid=(n_cores, n_steps),
        in_specs=[audio_spec, audio_spec, audio_spec, audio_spec],
        out_specs=out_spec,
        compiler_params=pltpu.CompilerParams(
            dimension_semantics=("parallel", "arbitrary"),
            vmem_limit_bytes=vmem_limit),
    )(s1, s2, s3, target)

    # ---- finalize (tiny, off the hot path): cross-core + cross-lane reduce,
    #      SI-SDR math and optional cross-entropy, all in plain JAX ----
    stats = stats.sum(axis=0).reshape(B, 7, _LANE).sum(axis=-1)      # (B, 7)
    tt = stats[:, 0]
    p1t, p1p = stats[:, 1], stats[:, 2]
    p2t, p2p = stats[:, 3], stats[:, 4]
    p3t, p3p = stats[:, 5], stats[:, 6]

    def sisdr_mean(pt, pp):
        # torchmetrics scale_invariant_signal_distortion_ratio (zero_mean=False)
        a = (pt + _F32_EPS) / (tt + _F32_EPS)
        tgt_e = a * a * tt                                  # ||a*t||^2
        # TODO(synk): expanded ||a*t - s||^2 loses precision for near-noiseless
        # samples vs the direct two-pass formula; acceptable for a training loss.
        noise_e = jnp.maximum(tgt_e - 2.0 * a * pt + pp, 0.0)
        return jnp.mean(10.0 * jnp.log10((tgt_e + _F32_EPS) / (noise_e + _F32_EPS)))

    loss = -((1.0 - alpha - beta) * sisdr_mean(p1t, p1p)
             + alpha * sisdr_mean(p2t, p2p)
             + beta * sisdr_mean(p3t, p3p))

    if sp_logits is not None:
        logp = jax.nn.log_softmax(sp_logits.astype(jnp.float32), axis=-1)
        ce = -jnp.mean(jnp.take_along_axis(logp, target_id[:, None], axis=-1))
        loss = loss + gamma * ce

    return loss


# ---------------- pure-JAX reference for verification ----------------
def _sisdr_ref(preds, target):
    eps = 1.1920929e-07
    a = (jnp.sum(preds * target, -1, keepdims=True) + eps) / (
        jnp.sum(target * target, -1, keepdims=True) + eps)
    ts = a * target
    noise = ts - preds
    val = 10.0 * jnp.log10((jnp.sum(ts * ts, -1) + eps)
                           / (jnp.sum(noise * noise, -1) + eps))
    return jnp.mean(val)


def _spex_loss_ref(s1, s2, s3, target, target_id, sp_logits, alpha, beta, gamma):
    loss = -((1 - alpha - beta) * _sisdr_ref(s1, target)
             + alpha * _sisdr_ref(s2, target)
             + beta * _sisdr_ref(s3, target))
    if sp_logits is not None:
        logp = jax.nn.log_softmax(sp_logits, axis=-1)
        ce = -jnp.mean(jnp.take_along_axis(logp, target_id[:, None], axis=-1))
        loss = loss + gamma * ce
    return loss


if __name__ == "__main__":
    key = jax.random.PRNGKey(0)
    B, T, C = 4, 1024, 16
    alpha, beta, gamma = 0.1, 0.1, 0.5

    k1, k2, k3, k4, k5, k6 = jax.random.split(key, 6)
    target = jax.random.normal(k1, (B, T), jnp.float32)
    s1 = target + 0.2 * jax.random.normal(k2, (B, T), jnp.float32)
    s2 = target + 0.3 * jax.random.normal(k3, (B, T), jnp.float32)
    s3 = target + 0.4 * jax.random.normal(k4, (B, T), jnp.float32)
    sp_logits = jax.random.normal(k5, (B, C), jnp.float32)
    target_id = jax.random.randint(k6, (B,), 0, C)

    # With classifier head.
    loss = spex_loss(s1, s2, s3, target, target_id, sp_logits,
                     alpha=alpha, beta=beta, gamma=gamma)
    loss = jax.block_until_ready(loss)
    ref = _spex_loss_ref(s1, s2, s3, target, target_id, sp_logits, alpha, beta, gamma)
    assert jnp.allclose(loss, ref, rtol=1e-3, atol=1e-3), (loss, ref)

    # Without classifier head.
    loss2 = jax.block_until_ready(
        spex_loss(s1, s2, s3, target, alpha=alpha, beta=beta))
    ref2 = _spex_loss_ref(s1, s2, s3, target, None, None, alpha, beta, 0.0)
    assert jnp.allclose(loss2, ref2, rtol=1e-3, atol=1e-3), (loss2, ref2)

    print("KERNEL_OK")
</pallas_src>

<mosaic_0001>
module attributes {stable_mosaic.version = 11 : i64} {
  func.func @_spex_stats_kernel(%arg0: i32, %arg1: i32, %arg2: memref<4x512xf32, #tpu.memory_space<vmem>>, %arg3: memref<4x512xf32, #tpu.memory_space<vmem>>, %arg4: memref<4x512xf32, #tpu.memory_space<vmem>>, %arg5: memref<4x512xf32, #tpu.memory_space<vmem>>, %arg6: memref<1x4x896xf32, #tpu.memory_space<vmem>>) attributes {dimension_semantics = [#tpu.dimension_semantics<parallel>, #tpu.dimension_semantics<arbitrary>], iteration_bounds = array<i64: 2, 1>, scalar_prefetch = 0 : i64, scratch_operands = 0 : i64, tpu.core_type = #tpu.core_type<tc>, window_params = [{transform_indices = @transform_0, window_bounds = array<i64: 4, 512>}, {transform_indices = @transform_1, window_bounds = array<i64: 4, 512>}, {transform_indices = @transform_2, window_bounds = array<i64: 4, 512>}, {transform_indices = @transform_3, window_bounds = array<i64: 4, 512>}, {transform_indices = @transform_4, window_bounds = array<i64: 1, 4, 896>}]} {
    %c0 = arith.constant 0 : index
    %c0_0 = arith.constant 0 : index
    %0 = vector.load %arg5[%c0, %c0_0] : memref<4x512xf32, #tpu.memory_space<vmem>>, vector<4x128xf32>
    %c0_1 = arith.constant 0 : index
    %c0_2 = arith.constant 0 : index
    %1 = vector.load %arg2[%c0_1, %c0_2] : memref<4x512xf32, #tpu.memory_space<vmem>>, vector<4x128xf32>
    %c0_3 = arith.constant 0 : index
    %c0_4 = arith.constant 0 : index
    %2 = vector.load %arg3[%c0_3, %c0_4] : memref<4x512xf32, #tpu.memory_space<vmem>>, vector<4x128xf32>
    %c0_5 = arith.constant 0 : index
    %c0_6 = arith.constant 0 : index
    %3 = vector.load %arg4[%c0_5, %c0_6] : memref<4x512xf32, #tpu.memory_space<vmem>>, vector<4x128xf32>
    %4 = arith.mulf %0, %0 : vector<4x128xf32>
    %5 = arith.mulf %1, %0 : vector<4x128xf32>
    %6 = arith.mulf %1, %1 : vector<4x128xf32>
    %7 = arith.mulf %2, %0 : vector<4x128xf32>
    %8 = arith.mulf %2, %2 : vector<4x128xf32>
    %9 = arith.mulf %3, %0 : vector<4x128xf32>
    %10 = arith.mulf %3, %3 : vector<4x128xf32>
    %c0_7 = arith.constant 0 : index
    %c128 = arith.constant 128 : index
    %11 = vector.load %arg5[%c0_7, %c128] : memref<4x512xf32, #tpu.memory_space<vmem>>, vector<4x128xf32>
    %c0_8 = arith.constant 0 : index
    %c128_9 = arith.constant 128 : index
    %12 = vector.load %arg2[%c0_8, %c128_9] : memref<4x512xf32, #tpu.memory_space<vmem>>, vector<4x128xf32>
    %c0_10 = arith.constant 0 : index
    %c128_11 = arith.constant 128 : index
    %13 = vector.load %arg3[%c0_10, %c128_11] : memref<4x512xf32, #tpu.memory_space<vmem>>, vector<4x128xf32>
    %c0_12 = arith.constant 0 : index
    %c128_13 = arith.constant 128 : index
    %14 = vector.load %arg4[%c0_12, %c128_13] : memref<4x512xf32, #tpu.memory_space<vmem>>, vector<4x128xf32>
    %15 = arith.mulf %11, %11 : vector<4x128xf32>
    %16 = arith.mulf %12, %11 : vector<4x128xf32>
    %17 = arith.mulf %12, %12 : vector<4x128xf32>
    %18 = arith.mulf %13, %11 : vector<4x128xf32>
    %19 = arith.mulf %13, %13 : vector<4x128xf32>
    %20 = arith.mulf %14, %11 : vector<4x128xf32>
    %21 = arith.mulf %14, %14 : vector<4x128xf32>
    %22 = arith.addf %4, %15 : vector<4x128xf32>
    %23 = arith.addf %5, %16 : vector<4x128xf32>
    %24 = arith.addf %6, %17 : vector<4x128xf32>
    %25 = arith.addf %7, %18 : vector<4x128xf32>
    %26 = arith.addf %8, %19 : vector<4x128xf32>
    %27 = arith.addf %9, %20 : vector<4x128xf32>
    %28 = arith.addf %10, %21 : vector<4x128xf32>
    %c0_14 = arith.constant 0 : index
    %c256 = arith.constant 256 : index
    %29 = vector.load %arg5[%c0_14, %c256] : memref<4x512xf32, #tpu.memory_space<vmem>>, vector<4x128xf32>
    %c0_15 = arith.constant 0 : index
    %c256_16 = arith.constant 256 : index
    %30 = vector.load %arg2[%c0_15, %c256_16] : memref<4x512xf32, #tpu.memory_space<vmem>>, vector<4x128xf32>
    %c0_17 = arith.constant 0 : index
    %c256_18 = arith.constant 256 : index
    %31 = vector.load %arg3[%c0_17, %c256_18] : memref<4x512xf32, #tpu.memory_space<vmem>>, vector<4x128xf32>
    %c0_19 = arith.constant 0 : index
    %c256_20 = arith.constant 256 : index
    %32 = vector.load %arg4[%c0_19, %c256_20] : memref<4x512xf32, #tpu.memory_space<vmem>>, vector<4x128xf32>
    %33 = arith.mulf %29, %29 : vector<4x128xf32>
    %34 = arith.mulf %30, %29 : vector<4x128xf32>
    %35 = arith.mulf %30, %30 : vector<4x128xf32>
    %36 = arith.mulf %31, %29 : vector<4x128xf32>
    %37 = arith.mulf %31, %31 : vector<4x128xf32>
    %38 = arith.mulf %32, %29 : vector<4x128xf32>
    %39 = arith.mulf %32, %32 : vector<4x128xf32>
    %40 = arith.addf %22, %33 : vector<4x128xf32>
    %41 = arith.addf %23, %34 : vector<4x128xf32>
    %42 = arith.addf %24, %35 : vector<4x128xf32>
    %43 = arith.addf %25, %36 : vector<4x128xf32>
    %44 = arith.addf %26, %37 : vector<4x128xf32>
    %45 = arith.addf %27, %38 : vector<4x128xf32>
    %46 = arith.addf %28, %39 : vector<4x128xf32>
    %c0_21 = arith.constant 0 : index
    %c384 = arith.constant 384 : index
    %47 = vector.load %arg5[%c0_21, %c384] : memref<4x512xf32, #tpu.memory_space<vmem>>, vector<4x128xf32>
    %c0_22 = arith.constant 0 : index
    %c384_23 = arith.constant 384 : index
    %48 = vector.load %arg2[%c0_22, %c384_23] : memref<4x512xf32, #tpu.memory_space<vmem>>, vector<4x128xf32>
    %c0_24 = arith.constant 0 : index
    %c384_25 = arith.constant 384 : index
    %49 = vector.load %arg3[%c0_24, %c384_25] : memref<4x512xf32, #tpu.memory_space<vmem>>, vector<4x128xf32>
    %c0_26 = arith.constant 0 : index
    %c384_27 = arith.constant 384 : index
    %50 = vector.load %arg4[%c0_26, %c384_27] : memref<4x512xf32, #tpu.memory_space<vmem>>, vector<4x128xf32>
    %51 = arith.mulf %47, %47 : vector<4x128xf32>
    %52 = arith.mulf %48, %47 : vector<4x128xf32>
    %53 = arith.mulf %48, %48 : vector<4x128xf32>
    %54 = arith.mulf %49, %47 : vector<4x128xf32>
    %55 = arith.mulf %49, %49 : vector<4x128xf32>
    %56 = arith.mulf %50, %47 : vector<4x128xf32>
    %57 = arith.mulf %50, %50 : vector<4x128xf32>
    %58 = arith.addf %40, %51 : vector<4x128xf32>
    %59 = arith.addf %41, %52 : vector<4x128xf32>
    %60 = arith.addf %42, %53 : vector<4x128xf32>
    %61 = arith.addf %43, %54 : vector<4x128xf32>
    %62 = arith.addf %44, %55 : vector<4x128xf32>
    %63 = arith.addf %45, %56 : vector<4x128xf32>
    %64 = arith.addf %46, %57 : vector<4x128xf32>
    %c0_i32 = arith.constant 0 : i32
    %65 = arith.cmpi eq, %arg1, %c0_i32 : i32
    %66 = arith.extui %65 : i1 to i32
    %c0_i32_28 = arith.constant 0 : i32
    %67 = arith.cmpi ne, %66, %c0_i32_28 : i32
    scf.if %67 {
      %c0_31 = arith.constant 0 : index
      %c0_32 = arith.constant 0 : index
      %c0_33 = arith.constant 0 : index
      %71 = vector.load %arg6[%c0_31, %c0_32, %c0_33] : memref<1x4x896xf32, #tpu.memory_space<vmem>>, vector<1x4x128xf32>
      %72 = vector.shape_cast %71 : vector<1x4x128xf32> to vector<4x128xf32>
      %73 = vector.shape_cast %58 : vector<4x128xf32> to vector<1x4x128xf32>
      tpu.vector_store %arg6[%c0_31, %c0_32, %c0_33], %73 {strides = array<i32>} : memref<1x4x896xf32, #tpu.memory_space<vmem>>, vector<1x4x128xf32>,
      %c0_34 = arith.constant 0 : index
      %c0_35 = arith.constant 0 : index
      %c128_36 = arith.constant 128 : index
      %74 = vector.load %arg6[%c0_34, %c0_35, %c128_36] : memref<1x4x896xf32, #tpu.memory_space<vmem>>, vector<1x4x128xf32>
      %75 = vector.shape_cast %74 : vector<1x4x128xf32> to vector<4x128xf32>
      %76 = vector.shape_cast %59 : vector<4x128xf32> to vector<1x4x128xf32>
      tpu.vector_store %arg6[%c0_34, %c0_35, %c128_36], %76 {strides = array<i32>} : memref<1x4x896xf32, #tpu.memory_space<vmem>>, vector<1x4x128xf32>,
      %c0_37 = arith.constant 0 : index
      %c0_38 = arith.constant 0 : index
      %c256_39 = arith.constant 256 : index
      %77 = vector.load %arg6[%c0_37, %c0_38, %c256_39] : memref<1x4x896xf32, #tpu.memory_space<vmem>>, vector<1x4x128xf32>
      %78 = vector.shape_cast %77 : vector<1x4x128xf32> to vector<4x128xf32>
      %79 = vector.shape_cast %60 : vector<4x128xf32> to vector<1x4x128xf32>
      tpu.vector_store %arg6[%c0_37, %c0_38, %c256_39], %79 {strides = array<i32>} : memref<1x4x896xf32, #tpu.memory_space<vmem>>, vector<1x4x128xf32>,
      %c0_40 = arith.constant 0 : index
      %c0_41 = arith.constant 0 : index
      %c384_42 = arith.constant 384 : index
      %80 = vector.load %arg6[%c0_40, %c0_41, %c384_42] : memref<1x4x896xf32, #tpu.memory_space<vmem>>, vector<1x4x128xf32>
      %81 = vector.shape_cast %80 : vector<1x4x128xf32> to vector<4x128xf32>
      %82 = vector.shape_cast %61 : vector<4x128xf32> to vector<1x4x128xf32>
      tpu.vector_store %arg6[%c0_40, %c0_41, %c384_42], %82 {strides = array<i32>} : memref<1x4x896xf32, #tpu.memory_space<vmem>>, vector<1x4x128xf32>,
      %c0_43 = arith.constant 0 : index
      %c0_44 = arith.constant 0 : index
      %c512 = arith.constant 512 : index
      %83 = vector.load %arg6[%c0_43, %c0_44, %c512] : memref<1x4x896xf32, #tpu.memory_space<vmem>>, vector<1x4x128xf32>
      %84 = vector.shape_cast %83 : vector<1x4x128xf32> to vector<4x128xf32>
      %85 = vector.shape_cast %62 : vector<4x128xf32> to vector<1x4x128xf32>
      tpu.vector_store %arg6[%c0_43, %c0_44, %c512], %85 {strides = array<i32>} : memref<1x4x896xf32, #tpu.memory_space<vmem>>, vector<1x4x128xf32>,
      %c0_45 = arith.constant 0 : index
      %c0_46 = arith.constant 0 : index
      %c640 = arith.constant 640 : index
      %86 = vector.load %arg6[%c0_45, %c0_46, %c640] : memref<1x4x896xf32, #tpu.memory_space<vmem>>, vector<1x4x128xf32>
      %87 = vector.shape_cast %86 : vector<1x4x128xf32> to vector<4x128xf32>
      %88 = vector.shape_cast %63 : vector<4x128xf32> to vector<1x4x128xf32>
      tpu.vector_store %arg6[%c0_45, %c0_46, %c640], %88 {strides = array<i32>} : memref<1x4x896xf32, #tpu.memory_space<vmem>>, vector<1x4x128xf32>,
      %c0_47 = arith.constant 0 : index
      %c0_48 = arith.constant 0 : index
      %c768 = arith.constant 768 : index
      %89 = vector.load %arg6[%c0_47, %c0_48, %c768] : memref<1x4x896xf32, #tpu.memory_space<vmem>>, vector<1x4x128xf32>
      %90 = vector.shape_cast %89 : vector<1x4x128xf32> to vector<4x128xf32>
      %91 = vector.shape_cast %64 : vector<4x128xf32> to vector<1x4x128xf32>
      tpu.vector_store %arg6[%c0_47, %c0_48, %c768], %91 {strides = array<i32>} : memref<1x4x896xf32, #tpu.memory_space<vmem>>, vector<1x4x128xf32>,
    } else {
    }
    %c0_i32_29 = arith.constant 0 : i32
    %68 = arith.cmpi sgt, %arg1, %c0_i32_29 : i32
    %69 = arith.extui %68 : i1 to i32
    %c0_i32_30 = arith.constant 0 : i32
    %70 = arith.cmpi ne, %69, %c0_i32_30 : i32
    scf.if %70 {
      %c0_31 = arith.constant 0 : index
      %c0_32 = arith.constant 0 : index
      %c0_33 = arith.constant 0 : index
      %71 = vector.load %arg6[%c0_31, %c0_32, %c0_33] : memref<1x4x896xf32, #tpu.memory_space<vmem>>, vector<1x4x128xf32>
      %72 = vector.shape_cast %71 : vector<1x4x128xf32> to vector<4x128xf32>
      %73 = arith.addf %72, %58 : vector<4x128xf32>
      %c0_34 = arith.constant 0 : index
      %c0_35 = arith.constant 0 : index
      %c0_36 = arith.constant 0 : index
      %74 = vector.load %arg6[%c0_34, %c0_35, %c0_36] : memref<1x4x896xf32, #tpu.memory_space<vmem>>, vector<1x4x128xf32>
      %75 = vector.shape_cast %74 : vector<1x4x128xf32> to vector<4x128xf32>
      %76 = vector.shape_cast %73 : vector<4x128xf32> to vector<1x4x128xf32>
      tpu.vector_store %arg6[%c0_34, %c0_35, %c0_36], %76 {strides = array<i32>} : memref<1x4x896xf32, #tpu.memory_space<vmem>>, vector<1x4x128xf32>,
      %c0_37 = arith.constant 0 : index
      %c0_38 = arith.constant 0 : index
      %c128_39 = arith.constant 128 : index
      %77 = vector.load %arg6[%c0_37, %c0_38, %c128_39] : memref<1x4x896xf32, #tpu.memory_space<vmem>>, vector<1x4x128xf32>
      %78 = vector.shape_cast %77 : vector<1x4x128xf32> to vector<4x128xf32>
      %79 = arith.addf %78, %59 : vector<4x128xf32>
      %c0_40 = arith.constant 0 : index
      %c0_41 = arith.constant 0 : index
      %c128_42 = arith.constant 128 : index
      %80 = vector.load %arg6[%c0_40, %c0_41, %c128_42] : memref<1x4x896xf32, #tpu.memory_space<vmem>>, vector<1x4x128xf32>
      %81 = vector.shape_cast %80 : vector<1x4x128xf32> to vector<4x128xf32>
      %82 = vector.shape_cast %79 : vector<4x128xf32> to vector<1x4x128xf32>
      tpu.vector_store %arg6[%c0_40, %c0_41, %c128_42], %82 {strides = array<i32>} : memref<1x4x896xf32, #tpu.memory_space<vmem>>, vector<1x4x128xf32>,
      %c0_43 = arith.constant 0 : index
      %c0_44 = arith.constant 0 : index
      %c256_45 = arith.constant 256 : index
      %83 = vector.load %arg6[%c0_43, %c0_44, %c256_45] : memref<1x4x896xf32, #tpu.memory_space<vmem>>, vector<1x4x128xf32>
      %84 = vector.shape_cast %83 : vector<1x4x128xf32> to vector<4x128xf32>
      %85 = arith.addf %84, %60 : vector<4x128xf32>
      %c0_46 = arith.constant 0 : index
      %c0_47 = arith.constant 0 : index
      %c256_48 = arith.constant 256 : index
      %86 = vector.load %arg6[%c0_46, %c0_47, %c256_48] : memref<1x4x896xf32, #tpu.memory_space<vmem>>, vector<1x4x128xf32>
      %87 = vector.shape_cast %86 : vector<1x4x128xf32> to vector<4x128xf32>
      %88 = vector.shape_cast %85 : vector<4x128xf32> to vector<1x4x128xf32>
      tpu.vector_store %arg6[%c0_46, %c0_47, %c256_48], %88 {strides = array<i32>} : memref<1x4x896xf32, #tpu.memory_space<vmem>>, vector<1x4x128xf32>,
      %c0_49 = arith.constant 0 : index
      %c0_50 = arith.constant 0 : index
      %c384_51 = arith.constant 384 : index
      %89 = vector.load %arg6[%c0_49, %c0_50, %c384_51] : memref<1x4x896xf32, #tpu.memory_space<vmem>>, vector<1x4x128xf32>
      %90 = vector.shape_cast %89 : vector<1x4x128xf32> to vector<4x128xf32>
      %91 = arith.addf %90, %61 : vector<4x128xf32>
      %c0_52 = arith.constant 0 : index
      %c0_53 = arith.constant 0 : index
      %c384_54 = arith.constant 384 : index
      %92 = vector.load %arg6[%c0_52, %c0_53, %c384_54] : memref<1x4x896xf32, #tpu.memory_space<vmem>>, vector<1x4x128xf32>
      %93 = vector.shape_cast %92 : vector<1x4x128xf32> to vector<4x128xf32>
      %94 = vector.shape_cast %91 : vector<4x128xf32> to vector<1x4x128xf32>
      tpu.vector_store %arg6[%c0_52, %c0_53, %c384_54], %94 {strides = array<i32>} : memref<1x4x896xf32, #tpu.memory_space<vmem>>, vector<1x4x128xf32>,
      %c0_55 = arith.constant 0 : index
      %c0_56 = arith.constant 0 : index
      %c512 = arith.constant 512 : index
      %95 = vector.load %arg6[%c0_55, %c0_56, %c512] : memref<1x4x896xf32, #tpu.memory_space<vmem>>, vector<1x4x128xf32>
      %96 = vector.shape_cast %95 : vector<1x4x128xf32> to vector<4x128xf32>
      %97 = arith.addf %96, %62 : vector<4x128xf32>
      %c0_57 = arith.constant 0 : index
      %c0_58 = arith.constant 0 : index
      %c512_59 = arith.constant 512 : index
      %98 = vector.load %arg6[%c0_57, %c0_58, %c512_59] : memref<1x4x896xf32, #tpu.memory_space<vmem>>, vector<1x4x128xf32>
      %99 = vector.shape_cast %98 : vector<1x4x128xf32> to vector<4x128xf32>
      %100 = vector.shape_cast %97 : vector<4x128xf32> to vector<1x4x128xf32>
      tpu.vector_store %arg6[%c0_57, %c0_58, %c512_59], %100 {strides = array<i32>} : memref<1x4x896xf32, #tpu.memory_space<vmem>>, vector<1x4x128xf32>,
      %c0_60 = arith.constant 0 : index
      %c0_61 = arith.constant 0 : index
      %c640 = arith.constant 640 : index
      %101 = vector.load %arg6[%c0_60, %c0_61, %c640] : memref<1x4x896xf32, #tpu.memory_space<vmem>>, vector<1x4x128xf32>
      %102 = vector.shape_cast %101 : vector<1x4x128xf32> to vector<4x128xf32>
      %103 = arith.addf %102, %63 : vector<4x128xf32>
      %c0_62 = arith.constant 0 : index
      %c0_63 = arith.constant 0 : index
      %c640_64 = arith.constant 640 : index
      %104 = vector.load %arg6[%c0_62, %c0_63, %c640_64] : memref<1x4x896xf32, #tpu.memory_space<vmem>>, vector<1x4x128xf32>
      %105 = vector.shape_cast %104 : vector<1x4x128xf32> to vector<4x128xf32>
      %106 = vector.shape_cast %103 : vector<4x128xf32> to vector<1x4x128xf32>
      tpu.vector_store %arg6[%c0_62, %c0_63, %c640_64], %106 {strides = array<i32>} : memref<1x4x896xf32, #tpu.memory_space<vmem>>, vector<1x4x128xf32>,
      %c0_65 = arith.constant 0 : index
      %c0_66 = arith.constant 0 : index
      %c768 = arith.constant 768 : index
      %107 = vector.load %arg6[%c0_65, %c0_66, %c768] : memref<1x4x896xf32, #tpu.memory_space<vmem>>, vector<1x4x128xf32>
      %108 = vector.shape_cast %107 : vector<1x4x128xf32> to vector<4x128xf32>
      %109 = arith.addf %108, %64 : vector<4x128xf32>
      %c0_67 = arith.constant 0 : index
      %c0_68 = arith.constant 0 : index
      %c768_69 = arith.constant 768 : index
      %110 = vector.load %arg6[%c0_67, %c0_68, %c768_69] : memref<1x4x896xf32, #tpu.memory_space<vmem>>, vector<1x4x128xf32>
      %111 = vector.shape_cast %110 : vector<1x4x128xf32> to vector<4x128xf32>
      %112 = vector.shape_cast %109 : vector<4x128xf32> to vector<1x4x128xf32>
      tpu.vector_store %arg6[%c0_67, %c0_68, %c768_69], %112 {strides = array<i32>} : memref<1x4x896xf32, #tpu.memory_space<vmem>>, vector<1x4x128xf32>,
    } else {
    }
    return
  }
  func.func @transform_0(%arg0: i32, %arg1: i32) -> (i32, i32) {
    %c1_i32 = arith.constant 1 : i32
    %0 = arith.muli %arg0, %c1_i32 : i32
    %1 = arith.addi %0, %arg1 : i32
    %c0_i32 = arith.constant 0 : i32
    %c0_i32_0 = arith.constant 0 : i32
    return %c0_i32, %1 : i32, i32
  }
  func.func @transform_1(%arg0: i32, %arg1: i32) -> (i32, i32) {
    %c1_i32 = arith.constant 1 : i32
    %0 = arith.muli %arg0, %c1_i32 : i32
    %1 = arith.addi %0, %arg1 : i32
    %c0_i32 = arith.constant 0 : i32
    %c0_i32_0 = arith.constant 0 : i32
    return %c0_i32, %1 : i32, i32
  }
  func.func @transform_2(%arg0: i32, %arg1: i32) -> (i32, i32) {
    %c1_i32 = arith.constant 1 : i32
    %0 = arith.muli %arg0, %c1_i32 : i32
    %1 = arith.addi %0, %arg1 : i32
    %c0_i32 = arith.constant 0 : i32
    %c0_i32_0 = arith.constant 0 : i32
    return %c0_i32, %1 : i32, i32
  }
  func.func @transform_3(%arg0: i32, %arg1: i32) -> (i32, i32) {
    %c1_i32 = arith.constant 1 : i32
    %0 = arith.muli %arg0, %c1_i32 : i32
    %1 = arith.addi %0, %arg1 : i32
    %c0_i32 = arith.constant 0 : i32
    %c0_i32_0 = arith.constant 0 : i32
    return %c0_i32, %1 : i32, i32
  }
  func.func @transform_4(%arg0: i32, %arg1: i32) -> (i32, i32, i32) {
    %c0_i32 = arith.constant 0 : i32
    %c0_i32_0 = arith.constant 0 : i32
    %c0_i32_1 = arith.constant 0 : i32
    return %arg0, %c0_i32, %c0_i32_0 : i32, i32, i32
  }
}

</mosaic_0001>

<llo_original>
// kernel: tpu_custom_call.1
$region0: #{tpu_custom_call.1}
  #allocation0 [shape = 'u32[]', space=smem, size = 0x4, offset = 0x4, fixed_abs, tag = 'smem constant byte address 0x4 - core index']
  #allocation1 [shape = 'u32[144,128]{1,0:T(1,128)}', space=vmem, size = 0x12000, scoped, tag = 'internal scratch']
  %s0 = inlined_call_operand.hbm [shape: f32[4,1024], index: 0, kind: input, shape index: {}]
  %s1 = inlined_call_operand.hbm [shape: f32[4,1024], index: 1, kind: input, shape index: {}]
  %s2 = inlined_call_operand.hbm [shape: f32[4,1024], index: 2, kind: input, shape index: {}]
  %s3 = inlined_call_operand.hbm [shape: f32[4,1024], index: 3, kind: input, shape index: {}]
  %s4 = inlined_call_operand.hbm [shape: f32[2,4,896], index: 4, kind: output, shape index: {}]
  %s5 = sld [smem:[#allocation0]]
  $region73: #{tpu_custom_call.1} parent=0
    _
  %s7 = ssub.s32 1, %s5
  %s8 = scalar_select 0, %s7, %s5
  $region1: #{tpu_custom_call.1} parent=0
    #allocation2 [shape = 'u8[16384]{0}', space=vmem, size = 0x4000, scoped, tag = 'input window, operand 0']
    #allocation3 [shape = 's32[2]{0}', space=sflag, size = 0x8, scoped, tag = 'scoped memory for tpu_custom_call.1']
    #allocation4 [shape = 's32[2]{0}', space=sflag, size = 0x8, scoped, tag = 'scoped memory for tpu_custom_call.1']
    #allocation5 [shape = 'u8[16384]{0}', space=vmem, size = 0x4000, scoped, tag = 'input window, operand 1']
    #allocation6 [shape = 's32[2]{0}', space=sflag, size = 0x8, scoped, tag = 'scoped memory for tpu_custom_call.1']
    #allocation7 [shape = 'u8[16384]{0}', space=vmem, size = 0x4000, scoped, tag = 'input window, operand 2']
    #allocation8 [shape = 'u8[16384]{0}', space=vmem, size = 0x4000, scoped, tag = 'input window, operand 3']
    #allocation9 [shape = 's32[2]{0}', space=sflag, size = 0x8, scoped, tag = 'scoped memory for tpu_custom_call.1']
    #allocation10 [shape = 'u8[28672]{0}', space=vmem, size = 0x7000, scoped, tag = 'output window, operand 0']
    %9 = vsyncpa [#allocation3], 0
    %s10 = scalar_lea.sflag [#allocation3], 1
    %11 = vsyncpa %s10, 0
    %12 = vsyncpa [#allocation6], 0
    %s13 = scalar_lea.sflag [#allocation6], 1
    %14 = vsyncpa %s13, 0
    %15 = vsyncpa [#allocation9], 0
    %s16 = scalar_lea.sflag [#allocation9], 1
    %17 = vsyncpa %s16, 0
    %18 = vsyncpa [#allocation4], 0
    %s19 = scalar_lea.sflag [#allocation4], 1
    %20 = vsyncpa %s19, 0
    loop: start=0, step=1, limit=4
    $region2: #{tpu_custom_call.1} parent=1 // loop_pre_header
      _
    $region3: #{tpu_custom_call.1} parent=1 // loop_header
      %s22 = sphi 0, %s26
      %p23 = scmp.ge.s32.totalorder %s22, 4
      %s29 = sphi 0, %s41
      %s30 = sphi 0, %s37
      %s31 = sphi 0, %s29
      %s32 = sphi 0, %s30
      %s33 = sphi 0, %s31
      %s34 = sphi 0, %s32
      %s46 = sphi 0, %s48
      %s49 = sphi 0, %s46
      %s50 = sphi 0, %s49
      %s66 = sphi 0, %s50
      %s74 = sphi 0, %s76
      %s77 = sphi 0, %s74
      %s78 = sphi 0, %s77
      %s94 = sphi 0, %s78
      %s102 = sphi 0, %s104
      %s105 = sphi 0, %s102
      %s106 = sphi 0, %s105
      %s122 = sphi 0, %s106
      %s130 = sphi 0, %s132
      %s133 = sphi 0, %s130
      %s134 = sphi 0, %s133
      %s150 = sphi 0, %s134
      %s156 = sphi 0, %s158
      %s159 = sphi 0, %s156
      %s160 = sphi 0, %s159
      %s176 = sphi 0, %s160
    $region4: #{tpu_custom_call.1} parent=1 // loop_header_branch
      %25 = sbr.rel (%p23) target = $region8
    $region5: #{tpu_custom_call.1} parent=1 // loop_body
      %s27 = ssub.s32 %s22, 1
      %s28 = ssub.s32 %s22, 2
      %s35 = sadd.s32 1, %s30
      %p36 = scmp.ge.s32.totalorder %s35, 1
      %s37 = scalar_select %p36, 0, %s35
      %s38 = sadd.s32 1, %s29
      %s39 = scalar_select %p36, %s38, %s29
      %p40 = scmp.ge.s32.totalorder %s39, 2
      %s41 = scalar_select %p40, 0, %s39
      %s42 = sadd.s32 %s29, %s30
      %s43 = sadd.s32 %s41, %s37
      %s44 = ssub.s32 %s42, %s43
      %p45 = scmp.eq.s32.totalorder %s44, 0
      %s47 = sadd.s32 %s46, 1
      %s48 = scalar_select %p45, %s46, %s47
      %p51 = pneg %p45
      %p52 = scmp.eq.s32.totalorder %s22, 1
      %p53 = por %p51, %p52
      %p54 = scmp.ne.s32.totalorder %s46, %s49
      %p55 = scmp.eq.s32.totalorder %s22, 0
      %p56 = por %p54, %p55
      %p57 = scmp.ne.s32.totalorder %s46, %s49
      %p58 = scmp.eq.s32.totalorder %s27, 1
      %p59 = por %p57, %p58
      %p60 = scmp.ne.s32.totalorder %s49, %s50
      %p61 = scmp.eq.s32.totalorder %s27, 0
      %p62 = por %p60, %p61
      %p63 = scmp.ne.s32.totalorder %s49, %s50
      %p64 = scmp.eq.s32.totalorder %s28, 1
      %p65 = por %p63, %p64
      %p67 = scmp.ne.s32.totalorder %s50, %s66
      %p68 = scmp.eq.s32.totalorder %s28, 0
      %p69 = por %p67, %p68
      %s70 = sadd.s32 %s29, %s30
      %s71 = sadd.s32 %s41, %s37
      %s72 = ssub.s32 %s70, %s71
      %p73 = scmp.eq.s32.totalorder %s72, 0
      %s75 = sadd.s32 %s74, 1
      %s76 = scalar_select %p73, %s74, %s75
      %p79 = pneg %p73
      %p80 = scmp.eq.s32.totalorder %s22, 1
      %p81 = por %p79, %p80
      %p82 = scmp.ne.s32.totalorder %s74, %s77
      %p83 = scmp.eq.s32.totalorder %s22, 0
      %p84 = por %p82, %p83
      %p85 = scmp.ne.s32.totalorder %s74, %s77
      %p86 = scmp.eq.s32.totalorder %s27, 1
      %p87 = por %p85, %p86
      %p88 = scmp.ne.s32.totalorder %s77, %s78
      %p89 = scmp.eq.s32.totalorder %s27, 0
      %p90 = por %p88, %p89
      %p91 = scmp.ne.s32.totalorder %s77, %s78
      %p92 = scmp.eq.s32.totalorder %s28, 1
      %p93 = por %p91, %p92
      %p95 = scmp.ne.s32.totalorder %s78, %s94
      %p96 = scmp.eq.s32.totalorder %s28, 0
      %p97 = por %p95, %p96
      %s98 = sadd.s32 %s29, %s30
      %s99 = sadd.s32 %s41, %s37
      %s100 = ssub.s32 %s98, %s99
      %p101 = scmp.eq.s32.totalorder %s100, 0
      %s103 = sadd.s32 %s102, 1
      %s104 = scalar_select %p101, %s102, %s103
      %p107 = pneg %p101
      %p108 = scmp.eq.s32.totalorder %s22, 1
      %p109 = por %p107, %p108
      %p110 = scmp.ne.s32.totalorder %s102, %s105
      %p111 = scmp.eq.s32.totalorder %s22, 0
      %p112 = por %p110, %p111
      %p113 = scmp.ne.s32.totalorder %s102, %s105
      %p114 = scmp.eq.s32.totalorder %s27, 1
      %p115 = por %p113, %p114
      %p116 = scmp.ne.s32.totalorder %s105, %s106
      %p117 = scmp.eq.s32.totalorder %s27, 0
      %p118 = por %p116, %p117
      %p119 = scmp.ne.s32.totalorder %s105, %s106
      %p120 = scmp.eq.s32.totalorder %s28, 1
      %p121 = por %p119, %p120
      %p123 = scmp.ne.s32.totalorder %s106, %s122
      %p124 = scmp.eq.s32.totalorder %s28, 0
      %p125 = por %p123, %p124
      %s126 = sadd.s32 %s29, %s30
      %s127 = sadd.s32 %s41, %s37
      %s128 = ssub.s32 %s126, %s127
      %p129 = scmp.eq.s32.totalorder %s128, 0
      %s131 = sadd.s32 %s130, 1
      %s132 = scalar_select %p129, %s130, %s131
      %p135 = pneg %p129
      %p136 = scmp.eq.s32.totalorder %s22, 1
      %p137 = por %p135, %p136
      %p138 = scmp.ne.s32.totalorder %s130, %s133
      %p139 = scmp.eq.s32.totalorder %s22, 0
      %p140 = por %p138, %p139
      %p141 = scmp.ne.s32.totalorder %s130, %s133
      %p142 = scmp.eq.s32.totalorder %s27, 1
      %p143 = por %p141, %p142
      %p144 = scmp.ne.s32.totalorder %s133, %s134
      %p145 = scmp.eq.s32.totalorder %s27, 0
      %p146 = por %p144, %p145
      %p147 = scmp.ne.s32.totalorder %s133, %s134
      %p148 = scmp.eq.s32.totalorder %s28, 1
      %p149 = por %p147, %p148
      %p151 = scmp.ne.s32.totalorder %s134, %s150
      %p152 = scmp.eq.s32.totalorder %s28, 0
      %p153 = por %p151, %p152
      %s154 = ssub.s32 %s29, %s41
      %p155 = scmp.eq.s32.totalorder %s154, 0
      %s157 = sadd.s32 %s156, 1
      %s158 = scalar_select %p155, %s156, %s157
      %p161 = pneg %p155
      %p162 = scmp.eq.s32.totalorder %s22, 1
      %p163 = por %p161, %p162
      %p164 = scmp.ne.s32.totalorder %s156, %s159
      %p165 = scmp.eq.s32.totalorder %s22, 0
      %p166 = por %p164, %p165
      %p167 = scmp.ne.s32.totalorder %s156, %s159
      %p168 = scmp.eq.s32.totalorder %s27, 1
      %p169 = por %p167, %p168
      %p170 = scmp.ne.s32.totalorder %s159, %s160
      %p171 = scmp.eq.s32.totalorder %s27, 0
      %p172 = por %p170, %p171
      %p173 = scmp.ne.s32.totalorder %s159, %s160
      %p174 = scmp.eq.s32.totalorder %s28, 1
      %p175 = por %p173, %p174
      %p177 = scmp.ne.s32.totalorder %s160, %s176
      %p178 = scmp.eq.s32.totalorder %s28, 0
      %p179 = por %p177, %p178
      %p180 = scmp.le.s32.totalorder 1, %s22
      %p181 = scmp.lt.s32.totalorder %s22, 3
      %p182 = pnand %p180, %p181
      %p183 = pneg %p182
      // Predicated region
      $region9: #{tpu_custom_call.1} parent=5 // pred_check
        _
      $region10: #{tpu_custom_call.1} parent=5 // pred_check_branch
        %185 = sbr.rel (%p182) target = $region12
      $region11: #{tpu_custom_call.1} parent=5 // pred_region
        %s186 = ssub.s32 %s22, 1
      $region12: #{tpu_custom_call.1} parent=5 // pred_fallthru
        _
      %p187 = scmp.lt.s32.totalorder %s22, 2
      // Predicated region
      $region13: #{tpu_custom_call.1} parent=5 // pred_check
        %p188 = pneg %p187
      $region14: #{tpu_custom_call.1} parent=5 // pred_check_branch
        %190 = sbr.rel (%p188) target = $region16
      $region15: #{tpu_custom_call.1} parent=5 // pred_region
        // Predicated region
        $region17: #{tpu_custom_call.1} parent=15 // pred_check
          %p191 = pneg %p56
        $region18: #{tpu_custom_call.1} parent=15 // pred_check_branch
          %193 = sbr.rel (%p191) target = $region20
        $region19: #{tpu_custom_call.1} parent=15 // pred_region
          %s194 = sand.u32 %s46, 1
          %s195 = scalar_lea.sflag [#allocation3], %s194
          %s196 = sand.u32 %s46, 1
          %s197 = smul.addr %s196, 16
          %s198 = scalar_lea.vmem [#allocation2], %s197
          %s199 = sadd.s32 %s29, %s30
          %s200 = smul.u32 4, %s199
          %s202 = ssub.s32 256, 256
          %203 = vsyncadd %s195, %s202
          %s204 = smul.addr %s200, 64
          %s205 = scalar_lea.hbm %s0, %s204
          %s207 = sshll.u32 %s198, 4
          %s208 = int_to_ptr.vmem [resolvable:$true] %s207
          %210 = dma.hbm_to_vmem [thread:$0]  %s205, 256, %s208, %s195
        $region20: #{tpu_custom_call.1} parent=15 // pred_fallthru
          _
        // Predicated region
        $region21: #{tpu_custom_call.1} parent=15 // pred_check
          %p211 = pneg %p84
        $region22: #{tpu_custom_call.1} parent=15 // pred_check_branch
          %213 = sbr.rel (%p211) target = $region24
        $region23: #{tpu_custom_call.1} parent=15 // pred_region
          %s214 = sand.u32 %s22, 1
          %s215 = scalar_lea.sflag [#allocation6], %s214
          %s216 = sand.u32 %s74, 1
          %s217 = smul.addr %s216, 16
          %s218 = scalar_lea.vmem [#allocation5], %s217
          %s219 = sadd.s32 %s29, %s30
          %s220 = smul.u32 4, %s219
          %s222 = ssub.s32 256, 256
          %223 = vsyncadd %s215, %s222
          %s224 = smul.addr %s220, 64
          %s225 = scalar_lea.hbm %s1, %s224
          %s227 = sshll.u32 %s218, 4
          %s228 = int_to_ptr.vmem [resolvable:$true] %s227
          %230 = dma.hbm_to_vmem [thread:$0]  %s225, 256, %s228, %s215
        $region24: #{tpu_custom_call.1} parent=15 // pred_fallthru
          _
        // Predicated region
        $region25: #{tpu_custom_call.1} parent=15 // pred_check
          %p231 = pneg %p112
        $region26: #{tpu_custom_call.1} parent=15 // pred_check_branch
          %233 = sbr.rel (%p231) target = $region28
        $region27: #{tpu_custom_call.1} parent=15 // pred_region
          %s234 = sand.u32 %s22, 1
          %s235 = scalar_lea.sflag [#allocation6], %s234
          %s236 = sand.u32 %s102, 1
          %s237 = smul.addr %s236, 16
          %s238 = scalar_lea.vmem [#allocation7], %s237
          %s239 = sadd.s32 %s29, %s30
          %s240 = smul.u32 4, %s239
          %s242 = ssub.s32 256, 256
          %243 = vsyncadd %s235, %s242
          %s244 = smul.addr %s240, 64
          %s245 = scalar_lea.hbm %s2, %s244
          %s247 = sshll.u32 %s238, 4
          %s248 = int_to_ptr.vmem [resolvable:$true] %s247
          %250 = dma.hbm_to_vmem [thread:$0]  %s245, 256, %s248, %s235
        $region28: #{tpu_custom_call.1} parent=15 // pred_fallthru
          _
        // Predicated region
        $region29: #{tpu_custom_call.1} parent=15 // pred_check
          %p251 = pneg %p140
        $region30: #{tpu_custom_call.1} parent=15 // pred_check_branch
          %253 = sbr.rel (%p251) target = $region32
        $region31: #{tpu_custom_call.1} parent=15 // pred_region
          %s254 = sand.u32 %s130, 1
          %s255 = scalar_lea.sflag [#allocation9], %s254
          %s256 = sand.u32 %s130, 1
          %s257 = smul.addr %s256, 16
          %s258 = scalar_lea.vmem [#allocation8], %s257
          %s259 = sadd.s32 %s29, %s30
          %s260 = smul.u32 4, %s259
          %s262 = ssub.s32 256, 256
          %263 = vsyncadd %s255, %s262
          %s264 = smul.addr %s260, 64
          %s265 = scalar_lea.hbm %s3, %s264
          %s267 = sshll.u32 %s258, 4
          %s268 = int_to_ptr.vmem [resolvable:$true] %s267
          %270 = dma.hbm_to_vmem [thread:$0]  %s265, 256, %s268, %s255
        $region32: #{tpu_custom_call.1} parent=15 // pred_fallthru
          _
      $region16: #{tpu_custom_call.1} parent=5 // pred_fallthru
        _
      %p271 = scmp.le.s32.totalorder 1, %s22
      %p272 = scmp.lt.s32.totalorder %s22, 3
      %p273 = pnand %p271, %p272
      %p274 = pneg %p273
      // Predicated region
      $region33: #{tpu_custom_call.1} parent=5 // pred_check
        _
      $region34: #{tpu_custom_call.1} parent=5 // pred_check_branch
        %276 = sbr.rel (%p273) target = $region36
      $region35: #{tpu_custom_call.1} parent=5 // pred_region
        %s277 = ssub.s32 %s22, 1
        %s278 = sand.u32 %s49, 1
        %s279 = scalar_lea.sflag [#allocation3], %s278
        %s280 = sand.u32 %s49, 1
        %s281 = smul.addr %s280, 16
        %s282 = scalar_lea.vmem [#allocation2], %s281
        // Predicated region
        $region37: #{tpu_custom_call.1} parent=35 // pred_check
          %p283 = pneg %p62
        $region38: #{tpu_custom_call.1} parent=35 // pred_check_branch
          %285 = sbr.rel (%p283) target = $region40
        $region39: #{tpu_custom_call.1} parent=35 // pred_region
          %286 = dma.done %s279, 256
        $region40: #{tpu_custom_call.1} parent=35 // pred_fallthru
          _
        %s287 = sand.u32 %s27, 1
        %s288 = scalar_lea.sflag [#allocation6], %s287
        %s289 = sand.u32 %s77, 1
        %s290 = smul.addr %s289, 16
        %s291 = scalar_lea.vmem [#allocation5], %s290
        // Predicated region
        $region41: #{tpu_custom_call.1} parent=35 // pred_check
          %p292 = pneg %p90
        $region42: #{tpu_custom_call.1} parent=35 // pred_check_branch
          %294 = sbr.rel (%p292) target = $region44
        $region43: #{tpu_custom_call.1} parent=35 // pred_region
          %295 = dma.done %s288, 256
        $region44: #{tpu_custom_call.1} parent=35 // pred_fallthru
          _
        %s296 = sand.u32 %s27, 1
        %s297 = scalar_lea.sflag [#allocation6], %s296
        %s298 = sand.u32 %s105, 1
        %s299 = smul.addr %s298, 16
        %s300 = scalar_lea.vmem [#allocation7], %s299
        // Predicated region
        $region45: #{tpu_custom_call.1} parent=35 // pred_check
          %p301 = pneg %p118
        $region46: #{tpu_custom_call.1} parent=35 // pred_check_branch
          %303 = sbr.rel (%p301) target = $region48
        $region47: #{tpu_custom_call.1} parent=35 // pred_region
          %304 = dma.done %s297, 256
        $region48: #{tpu_custom_call.1} parent=35 // pred_fallthru
          _
        %s305 = sand.u32 %s133, 1
        %s306 = scalar_lea.sflag [#allocation9], %s305
        %s307 = sand.u32 %s133, 1
        %s308 = smul.addr %s307, 16
        %s309 = scalar_lea.vmem [#allocation8], %s308
        // Predicated region
        $region49: #{tpu_custom_call.1} parent=35 // pred_check
          %p310 = pneg %p146
        $region50: #{tpu_custom_call.1} parent=35 // pred_check_branch
          %312 = sbr.rel (%p310) target = $region52
        $region51: #{tpu_custom_call.1} parent=35 // pred_region
          %313 = dma.done %s306, 256
        $region52: #{tpu_custom_call.1} parent=35 // pred_fallthru
          _
        %s314 = sand.u32 %s49, 1
        %s315 = scalar_lea.sflag [#allocation3], %s314
        %s316 = sand.u32 %s49, 1
        %s317 = smul.addr %s316, 16
        %s318 = scalar_lea.vmem [#allocation2], %s317
        %p319 = pneg %p62
        %p320 = pneg %p59
        %s321 = sand.u32 %s27, 1
        %s322 = scalar_lea.sflag [#allocation6], %s321
        %s323 = sand.u32 %s77, 1
        %s324 = smul.addr %s323, 16
        %s325 = scalar_lea.vmem [#allocation5], %s324
        %p326 = pneg %p90
        %p327 = pneg %p87
        %s328 = sand.u32 %s27, 1
        %s329 = scalar_lea.sflag [#allocation6], %s328
        %s330 = sand.u32 %s105, 1
        %s331 = smul.addr %s330, 16
        %s332 = scalar_lea.vmem [#allocation7], %s331
        %p333 = pneg %p118
        %p334 = pneg %p115
        %s335 = sand.u32 %s133, 1
        %s336 = scalar_lea.sflag [#allocation9], %s335
        %s337 = sand.u32 %s133, 1
        %s338 = smul.addr %s337, 16
        %s339 = scalar_lea.vmem [#allocation8], %s338
        %p340 = pneg %p146
        %p341 = pneg %p143
        %p342 = pneg %p172
        %p343 = pneg %p169
        %s344 = sand.u32 %s159, 1
        %s345 = scalar_lea.sflag [#allocation4], %s344
        %s346 = sand.u32 %s159, 1
        %s347 = smul.addr %s346, 28
        %s348 = scalar_lea.vmem [#allocation10], %s347
        %s349 = sadd.s32 %s31, %s32
        %s350 = smul.u32 4, %s349
        %s351 = sadd.s32 %s31, %s32
        %s352 = smul.u32 4, %s351
        %s353 = sadd.s32 %s31, %s32
        %s354 = smul.u32 4, %s353
        %s355 = sadd.s32 %s31, %s32
        %s356 = smul.u32 4, %s355
        %v357 = vld [vmem:[%s309] sm:$0xf]
        %v358 = vld [vmem:[%s282] sm:$0xf]
        %v359 = vld [vmem:[%s291] sm:$0xf]
        %v360 = vld [vmem:[%s300] sm:$0xf]
        %v361 = vmul.f32 %v357, %v357
        %v362 = vmul.f32 %v358, %v357
        %v363 = vmul.f32 %v358, %v358
        %v364 = vmul.f32 %v359, %v357
        %v365 = vmul.f32 %v359, %v359
        %v366 = vmul.f32 %v360, %v357
        %v367 = vmul.f32 %v360, %v360
        %v368 = vld [vmem:[%s309 + $0x4] sm:$0xf]
        %v369 = vld [vmem:[%s282 + $0x4] sm:$0xf]
        %v370 = vld [vmem:[%s291 + $0x4] sm:$0xf]
        %v371 = vld [vmem:[%s300 + $0x4] sm:$0xf]
        %v372 = vmul.f32 %v368, %v368
        %v373 = vmul.f32 %v369, %v368
        %v374 = vmul.f32 %v369, %v369
        %v375 = vmul.f32 %v370, %v368
        %v376 = vmul.f32 %v370, %v370
        %v377 = vmul.f32 %v371, %v368
        %v378 = vmul.f32 %v371, %v371
        %v379 = vadd.f32 %v361, %v372
        %v380 = vadd.f32 %v362, %v373
        %v381 = vadd.f32 %v363, %v374
        %v382 = vadd.f32 %v364, %v375
        %v383 = vadd.f32 %v365, %v376
        %v384 = vadd.f32 %v366, %v377
        %v385 = vadd.f32 %v367, %v378
        %v386 = vld [vmem:[%s309 + $0x8] sm:$0xf]
        %v387 = vld [vmem:[%s282 + $0x8] sm:$0xf]
        %v388 = vld [vmem:[%s291 + $0x8] sm:$0xf]
        %v389 = vld [vmem:[%s300 + $0x8] sm:$0xf]
        %v390 = vmul.f32 %v386, %v386
        %v391 = vmul.f32 %v387, %v386
        %v392 = vmul.f32 %v387, %v387
        %v393 = vmul.f32 %v388, %v386
        %v394 = vmul.f32 %v388, %v388
        %v395 = vmul.f32 %v389, %v386
        %v396 = vmul.f32 %v389, %v389
        %v397 = vadd.f32 %v379, %v390
        %v398 = vadd.f32 %v380, %v391
        %v399 = vadd.f32 %v381, %v392
        %v400 = vadd.f32 %v382, %v393
        %v401 = vadd.f32 %v383, %v394
        %v402 = vadd.f32 %v384, %v395
        %v403 = vadd.f32 %v385, %v396
        %v404 = vld [vmem:[%s309 + $0xc] sm:$0xf]
        %v405 = vld [vmem:[%s282 + $0xc] sm:$0xf]
        %v406 = vld [vmem:[%s291 + $0xc] sm:$0xf]
        %v407 = vld [vmem:[%s300 + $0xc] sm:$0xf]
        %v408 = vmul.f32 %v404, %v404
        %v409 = vmul.f32 %v405, %v404
        %v410 = vmul.f32 %v405, %v405
        %v411 = vmul.f32 %v406, %v404
        %v412 = vmul.f32 %v406, %v406
        %v413 = vmul.f32 %v407, %v404
        %v414 = vmul.f32 %v407, %v407
        %v415 = vadd.f32 %v397, %v408
        %v416 = vadd.f32 %v398, %v409
        %v417 = vadd.f32 %v399, %v410
        %v418 = vadd.f32 %v400, %v411
        %v419 = vadd.f32 %v401, %v412
        %v420 = vadd.f32 %v402, %v413
        %v421 = vadd.f32 %v403, %v414
        %p422 = scmp.eq.s32.totalorder %s32, 0
        // Predicated region
        $region53: #{tpu_custom_call.1} parent=35 // pred_check
          %p423 = pneg %p422
        $region54: #{tpu_custom_call.1} parent=35 // pred_check_branch
          %425 = sbr.rel (%p423) target = $region56
        $region55: #{tpu_custom_call.1} parent=35 // pred_region
          %426 = vst [vmem:[%s348] sm:$0xf] %v415
          %427 = vst [vmem:[%s348 + $0x4] sm:$0xf] %v416
          %428 = vst [vmem:[%s348 + $0x8] sm:$0xf] %v417
          %429 = vst [vmem:[%s348 + $0xc] sm:$0xf] %v418
          %430 = vst [vmem:[%s348 + $0x10] sm:$0xf] %v419
          %431 = vst [vmem:[%s348 + $0x14] sm:$0xf] %v420
          %432 = vst [vmem:[%s348 + $0x18] sm:$0xf] %v421
        $region56: #{tpu_custom_call.1} parent=35 // pred_fallthru
          _
        %p433 = scmp.gt.s32.totalorder %s32, 0
        // Predicated region
        $region57: #{tpu_custom_call.1} parent=35 // pred_check
          %p434 = pneg %p433
        $region58: #{tpu_custom_call.1} parent=35 // pred_check_branch
          %436 = sbr.rel (%p434) target = $region60
        $region59: #{tpu_custom_call.1} parent=35 // pred_region
          %v437 = vld [vmem:[%s348] sm:$0xf]
          %v438 = vadd.f32 %v437, %v415
          %439 = vst [vmem:[%s348] sm:$0xf] %v438
          %v440 = vld [vmem:[%s348 + $0x4] sm:$0xf]
          %v441 = vadd.f32 %v440, %v416
          %442 = vst [vmem:[%s348 + $0x4] sm:$0xf] %v441
          %v443 = vld [vmem:[%s348 + $0x8] sm:$0xf]
          %v444 = vadd.f32 %v443, %v417
          %445 = vst [vmem:[%s348 + $0x8] sm:$0xf] %v444
          %v446 = vld [vmem:[%s348 + $0xc] sm:$0xf]
          %v447 = vadd.f32 %v446, %v418
          %448 = vst [vmem:[%s348 + $0xc] sm:$0xf] %v447
          %v449 = vld [vmem:[%s348 + $0x10] sm:$0xf]
          %v450 = vadd.f32 %v449, %v419
          %451 = vst [vmem:[%s348 + $0x10] sm:$0xf] %v450
          %v452 = vld [vmem:[%s348 + $0x14] sm:$0xf]
          %v453 = vadd.f32 %v452, %v420
          %454 = vst [vmem:[%s348 + $0x14] sm:$0xf] %v453
          %v455 = vld [vmem:[%s348 + $0x18] sm:$0xf]
          %v456 = vadd.f32 %v455, %v421
          %457 = vst [vmem:[%s348 + $0x18] sm:$0xf] %v456
        $region60: #{tpu_custom_call.1} parent=35 // pred_fallthru
          _
        %s458 = sand.u32 %s159, 1
        %s459 = scalar_lea.sflag [#allocation4], %s458
        %s460 = sand.u32 %s159, 1
        %s461 = smul.addr %s460, 28
        %s462 = scalar_lea.vmem [#allocation10], %s461
        // Predicated region
        $region61: #{tpu_custom_call.1} parent=35 // pred_check
          %p463 = pneg %p169
        $region62: #{tpu_custom_call.1} parent=35 // pred_check_branch
          %465 = sbr.rel (%p463) target = $region64
        $region63: #{tpu_custom_call.1} parent=35 // pred_region
          %s467 = ssub.s32 448, 448
          %468 = vsyncadd %s459, %s467
          %s469 = smul.addr %s31, 7
          %s470 = smul.addr %s469, 64
          %s471 = scalar_lea.hbm %s4, %s470
          %s473 = sshll.u32 %s462, 4
          %s474 = int_to_ptr.vmem [resolvable:$true] %s473
          %476 = dma.vmem_to_hbm [thread:$0]  %s474, 448, %s471, %s459
        $region64: #{tpu_custom_call.1} parent=35 // pred_fallthru
          _
      $region36: #{tpu_custom_call.1} parent=5 // pred_fallthru
        _
      %p477 = scmp.le.s32.totalorder 2, %s22
      // Predicated region
      $region65: #{tpu_custom_call.1} parent=5 // pred_check
        %p478 = pneg %p477
      $region66: #{tpu_custom_call.1} parent=5 // pred_check_branch
        %480 = sbr.rel (%p478) target = $region68
      $region67: #{tpu_custom_call.1} parent=5 // pred_region
        %s481 = ssub.s32 %s22, 2
        // Predicated region
        $region69: #{tpu_custom_call.1} parent=67 // pred_check
          %p482 = pneg %p175
        $region70: #{tpu_custom_call.1} parent=67 // pred_check_branch
          %484 = sbr.rel (%p482) target = $region72
        $region71: #{tpu_custom_call.1} parent=67 // pred_region
          %s485 = sand.u32 %s160, 1
          %s486 = scalar_lea.sflag [#allocation4], %s485
          %s487 = sand.u32 %s160, 1
          %s488 = smul.addr %s487, 28
          %s489 = scalar_lea.vmem [#allocation10], %s488
          %490 = dma.done %s486, 448
        $region72: #{tpu_custom_call.1} parent=67 // pred_fallthru
          _
      $region68: #{tpu_custom_call.1} parent=5 // pred_fallthru
        _
    $region6: #{tpu_custom_call.1} parent=1 // loop_footer
      %s26 = sadd.s32 1, %s22
    $region7: #{tpu_custom_call.1} parent=1 // loop_footer_branch
      %21 = sbr.rel target = $region3
    $region8: #{tpu_custom_call.1} parent=1 // loop_exit
      _
    %491 = vsyncpa [#allocation3], 1
    %s492 = scalar_lea.sflag [#allocation3], 1
    %493 = vsyncpa %s492, 1
    %494 = vsyncpa [#allocation6], 1
    %s495 = scalar_lea.sflag [#allocation6], 1
    %496 = vsyncpa %s495, 1
    %497 = vsyncpa [#allocation9], 1
    %s498 = scalar_lea.sflag [#allocation9], 1
    %499 = vsyncpa %s498, 1
    %500 = vsyncpa [#allocation4], 1
    %s501 = scalar_lea.sflag [#allocation4], 1
    %502 = vsyncpa %s501, 1

</llo_original>
